<compile_context>
chip_gen: v7x
topology: tpu7x:2x2x1
jax: 0.10.0
libtpu: 0.0.40
codegen_flags: <defaults>
</compile_context>

<pallas_src>
import functools

import jax
import jax.numpy as jnp
from jax.experimental import pallas as pl
from jax.experimental.pallas import tpu as pltpu


def spatial_attention_kernel(w_ref, x_ref, o_ref, *, kernel_size, pad):
    """One tile of TB batch rows.

    w_ref: (2, K) f32 in SMEM. Row 0 = avg taps (pre-scaled by 1/C), row 1 = max taps.
    x_ref: (TB, C, L) f32 in VMEM (unpadded).
    o_ref: (TB, L) f32 in VMEM (lane-dense in L, sublane-dense in TB).
    """
    K = kernel_size

    x = x_ref[...]                                   # (TB, C, L); C on sublanes, L on lanes
    TB = x.shape[0]
    L = x.shape[2]

    # Channel pooling (sublane reductions). 1/C is already folded into w row 0.
    avg = jnp.sum(x, axis=1)                         # (TB, L)
    mx = jnp.max(x, axis=1)                          # (TB, L)

    # Zero-pad the pooled signals (C-times smaller than x) in registers.
    # Mean/max over C of a zero column is 0, so this matches Conv1d padding.
    zeros = jnp.zeros((TB, pad), dtype=jnp.float32)
    avg_p = jnp.concatenate([zeros, avg, zeros], axis=-1)   # (TB, L + 2*pad)
    mx_p = jnp.concatenate([zeros, mx, zeros], axis=-1)     # (TB, L + 2*pad)

    # K-tap conv as static lane slices times scalar taps (fully unrolled; VPU/XLU).
    acc = jnp.zeros((TB, L), dtype=jnp.float32)
    for k in range(K):
        acc = acc + w_ref[0, k] * avg_p[:, k:k + L] + w_ref[1, k] * mx_p[:, k:k + L]

    o_ref[...] = jax.nn.sigmoid(acc)                 # EUP; sublane/lane-dense store


def spatial_attention(x, w, *, kernel_size=7):
    """x: (B, C, L) f32, w: (2, K) f32 (Conv1d(2, 1, K, bias=False) weight squeezed)."""
    B, C, L = x.shape
    K = kernel_size
    assert K % 2 == 1, "kernel_size must be odd (module allows 3 or 7)"
    assert w.shape == (2, K)
    pad = K // 2

    # Fold the 1/C mean factor into the avg-channel taps (free in the wrapper).
    w_scaled = (w * jnp.array([[1.0 / C], [1.0]], dtype=jnp.float32)).astype(jnp.float32)

    # Batch rows per grid step: largest divisor of B that is <= 8, so output
    # stores are sublane-dense and no partial-block handling is needed.
    TB = 1
    for t in (8, 4, 2, 1):
        if B % t == 0:
            TB = t
            break

    kernel = functools.partial(spatial_attention_kernel, kernel_size=K, pad=pad)

    out2d = pl.pallas_call(
        kernel,
        out_shape=jax.ShapeDtypeStruct((B, L), jnp.float32),
        grid=(B // TB,),
        in_specs=[
            pl.BlockSpec(memory_space=pltpu.MemorySpace.SMEM),    # conv taps (scalars)
            pl.BlockSpec((TB, C, L), lambda b: (b, 0, 0)),        # TB unpadded batch rows
        ],
        out_specs=pl.BlockSpec((TB, L), lambda b: (b, 0)),
        compiler_params=pltpu.CompilerParams(
            dimension_semantics=("parallel",),
            vmem_limit_bytes=32 * 1024 * 1024,
        ),
        cost_estimate=pl.CostEstimate(
            flops=B * (2 * C * L + 4 * K * L),
            transcendentals=B * L,
            bytes_accessed=(x.size + w.size + B * L) * 4,
        ),
    )(w_scaled, x)

    # (B, L) -> (B, 1, L): wrapper-side reshape is free layout plumbing.
    return out2d[:, None, :]


def spatial_attention_ref(x, w):
    """Pure-JAX reference matching the PyTorch module."""
    avg = jnp.mean(x, axis=1, keepdims=True)             # (B, 1, L)
    mx = jnp.max(x, axis=1, keepdims=True)               # (B, 1, L)
    p = jnp.concatenate([avg, mx], axis=1)               # (B, 2, L)
    K = w.shape[1]
    pad = K // 2
    out = jax.lax.conv_general_dilated(
        p, w[None],                                      # rhs: (O=1, I=2, K)
        window_strides=(1,), padding=[(pad, pad)],
        dimension_numbers=("NCH", "OIH", "NCH"))
    return jax.nn.sigmoid(out)                           # (B, 1, L)


if __name__ == "__main__":
    B, C, L = 2, 8, 16
    K = 7

    key = jax.random.PRNGKey(0)
    kx, kw = jax.random.split(key)
    x = jax.random.normal(kx, (B, C, L), dtype=jnp.float32)
    # Conv1d(2, 1, K, bias=False) weight is (1, 2, K) in PyTorch; pass it squeezed.
    w = jax.random.normal(kw, (2, K), dtype=jnp.float32) * 0.2

    out = spatial_attention(x, w, kernel_size=K)
    out = jax.block_until_ready(out)

    ref = spatial_attention_ref(x, w)
    assert out.shape == (B, 1, L)
    assert jnp.allclose(out, ref, atol=1e-5, rtol=1e-5), "mismatch vs reference"

    print("KERNEL_OK")
</pallas_src>

<mosaic_0001>
module attributes {stable_mosaic.version = 11 : i64} {
  func.func @spatial_attention_kernel(%arg0: i32, %arg1: memref<2x7xf32, #tpu.memory_space<smem>>, %arg2: memref<2x8x16xf32, #tpu.memory_space<vmem>>, %arg3: memref<2x16xf32, #tpu.memory_space<vmem>>) attributes {dimension_semantics = [#tpu.dimension_semantics<parallel>], iteration_bounds = array<i64: 1>, scalar_prefetch = 0 : i64, scratch_operands = 0 : i64, tpu.core_type = #tpu.core_type<tc>, window_params = [{transform_indices = @transform_0, window_bounds = array<i64: 2, 7>}, {transform_indices = @transform_1, window_bounds = array<i64: 2, 8, 16>}, {transform_indices = @transform_2, window_bounds = array<i64: 2, 16>}]} {
    %c0 = arith.constant 0 : index
    %c0_0 = arith.constant 0 : index
    %c0_1 = arith.constant 0 : index
    %0 = vector.load %arg2[%c0, %c0_0, %c0_1] : memref<2x8x16xf32, #tpu.memory_space<vmem>>, vector<2x8x16xf32>
    %cst = arith.constant dense<0.000000e+00> : vector<2x16xf32>
    %1 = vector.multi_reduction <add>, %0, %cst [1] : vector<2x8x16xf32> to vector<2x16xf32>
    %cst_2 = arith.constant dense<0xFF800000> : vector<2x16xf32>
    %2 = vector.multi_reduction <maximumf>, %0, %cst_2 [1] : vector<2x8x16xf32> to vector<2x16xf32>
    %cst_3 = arith.constant 0.000000e+00 : f32
    %3 = vector.broadcast %cst_3 : f32 to vector<2x3xf32>
    %4 = tpu.concatenate %3, %1, %3 in 1 : vector<2x3xf32>, vector<2x16xf32>, vector<2x3xf32> -> vector<2x22xf32>
    %5 = tpu.concatenate %3, %2, %3 in 1 : vector<2x3xf32>, vector<2x16xf32>, vector<2x3xf32> -> vector<2x22xf32>
    %cst_4 = arith.constant 0.000000e+00 : f32
    %6 = vector.broadcast %cst_4 : f32 to vector<2x16xf32>
    %c0_5 = arith.constant 0 : index
    %c0_6 = arith.constant 0 : index
    %7 = memref.load %arg1[%c0_5, %c0_6] : memref<2x7xf32, #tpu.memory_space<smem>>
    %8 = vector.extract_strided_slice %4 {offsets = [0, 0], sizes = [2, 16], strides = [1, 1]} : vector<2x22xf32> to vector<2x16xf32>
    %9 = vector.broadcast %7 : f32 to vector<2x16xf32>
    %10 = arith.mulf %9, %8 : vector<2x16xf32>
    %11 = arith.addf %6, %10 : vector<2x16xf32>
    %c1 = arith.constant 1 : index
    %c0_7 = arith.constant 0 : index
    %12 = memref.load %arg1[%c1, %c0_7] : memref<2x7xf32, #tpu.memory_space<smem>>
    %13 = vector.extract_strided_slice %5 {offsets = [0, 0], sizes = [2, 16], strides = [1, 1]} : vector<2x22xf32> to vector<2x16xf32>
    %14 = vector.broadcast %12 : f32 to vector<2x16xf32>
    %15 = arith.mulf %14, %13 : vector<2x16xf32>
    %16 = arith.addf %11, %15 : vector<2x16xf32>
    %c0_8 = arith.constant 0 : index
    %c1_9 = arith.constant 1 : index
    %17 = memref.load %arg1[%c0_8, %c1_9] : memref<2x7xf32, #tpu.memory_space<smem>>
    %18 = vector.extract_strided_slice %4 {offsets = [0, 1], sizes = [2, 16], strides = [1, 1]} : vector<2x22xf32> to vector<2x16xf32>
    %19 = vector.broadcast %17 : f32 to vector<2x16xf32>
    %20 = arith.mulf %19, %18 : vector<2x16xf32>
    %21 = arith.addf %16, %20 : vector<2x16xf32>
    %c1_10 = arith.constant 1 : index
    %c1_11 = arith.constant 1 : index
    %22 = memref.load %arg1[%c1_10, %c1_11] : memref<2x7xf32, #tpu.memory_space<smem>>
    %23 = vector.extract_strided_slice %5 {offsets = [0, 1], sizes = [2, 16], strides = [1, 1]} : vector<2x22xf32> to vector<2x16xf32>
    %24 = vector.broadcast %22 : f32 to vector<2x16xf32>
    %25 = arith.mulf %24, %23 : vector<2x16xf32>
    %26 = arith.addf %21, %25 : vector<2x16xf32>
    %c0_12 = arith.constant 0 : index
    %c2 = arith.constant 2 : index
    %27 = memref.load %arg1[%c0_12, %c2] : memref<2x7xf32, #tpu.memory_space<smem>>
    %28 = vector.extract_strided_slice %4 {offsets = [0, 2], sizes = [2, 16], strides = [1, 1]} : vector<2x22xf32> to vector<2x16xf32>
    %29 = vector.broadcast %27 : f32 to vector<2x16xf32>
    %30 = arith.mulf %29, %28 : vector<2x16xf32>
    %31 = arith.addf %26, %30 : vector<2x16xf32>
    %c1_13 = arith.constant 1 : index
    %c2_14 = arith.constant 2 : index
    %32 = memref.load %arg1[%c1_13, %c2_14] : memref<2x7xf32, #tpu.memory_space<smem>>
    %33 = vector.extract_strided_slice %5 {offsets = [0, 2], sizes = [2, 16], strides = [1, 1]} : vector<2x22xf32> to vector<2x16xf32>
    %34 = vector.broadcast %32 : f32 to vector<2x16xf32>
    %35 = arith.mulf %34, %33 : vector<2x16xf32>
    %36 = arith.addf %31, %35 : vector<2x16xf32>
    %c0_15 = arith.constant 0 : index
    %c3 = arith.constant 3 : index
    %37 = memref.load %arg1[%c0_15, %c3] : memref<2x7xf32, #tpu.memory_space<smem>>
    %38 = vector.extract_strided_slice %4 {offsets = [0, 3], sizes = [2, 16], strides = [1, 1]} : vector<2x22xf32> to vector<2x16xf32>
    %39 = vector.broadcast %37 : f32 to vector<2x16xf32>
    %40 = arith.mulf %39, %38 : vector<2x16xf32>
    %41 = arith.addf %36, %40 : vector<2x16xf32>
    %c1_16 = arith.constant 1 : index
    %c3_17 = arith.constant 3 : index
    %42 = memref.load %arg1[%c1_16, %c3_17] : memref<2x7xf32, #tpu.memory_space<smem>>
    %43 = vector.extract_strided_slice %5 {offsets = [0, 3], sizes = [2, 16], strides = [1, 1]} : vector<2x22xf32> to vector<2x16xf32>
    %44 = vector.broadcast %42 : f32 to vector<2x16xf32>
    %45 = arith.mulf %44, %43 : vector<2x16xf32>
    %46 = arith.addf %41, %45 : vector<2x16xf32>
    %c0_18 = arith.constant 0 : index
    %c4 = arith.constant 4 : index
    %47 = memref.load %arg1[%c0_18, %c4] : memref<2x7xf32, #tpu.memory_space<smem>>
    %48 = vector.extract_strided_slice %4 {offsets = [0, 4], sizes = [2, 16], strides = [1, 1]} : vector<2x22xf32> to vector<2x16xf32>
    %49 = vector.broadcast %47 : f32 to vector<2x16xf32>
    %50 = arith.mulf %49, %48 : vector<2x16xf32>
    %51 = arith.addf %46, %50 : vector<2x16xf32>
    %c1_19 = arith.constant 1 : index
    %c4_20 = arith.constant 4 : index
    %52 = memref.load %arg1[%c1_19, %c4_20] : memref<2x7xf32, #tpu.memory_space<smem>>
    %53 = vector.extract_strided_slice %5 {offsets = [0, 4], sizes = [2, 16], strides = [1, 1]} : vector<2x22xf32> to vector<2x16xf32>
    %54 = vector.broadcast %52 : f32 to vector<2x16xf32>
    %55 = arith.mulf %54, %53 : vector<2x16xf32>
    %56 = arith.addf %51, %55 : vector<2x16xf32>
    %c0_21 = arith.constant 0 : index
    %c5 = arith.constant 5 : index
    %57 = memref.load %arg1[%c0_21, %c5] : memref<2x7xf32, #tpu.memory_space<smem>>
    %58 = vector.extract_strided_slice %4 {offsets = [0, 5], sizes = [2, 16], strides = [1, 1]} : vector<2x22xf32> to vector<2x16xf32>
    %59 = vector.broadcast %57 : f32 to vector<2x16xf32>
    %60 = arith.mulf %59, %58 : vector<2x16xf32>
    %61 = arith.addf %56, %60 : vector<2x16xf32>
    %c1_22 = arith.constant 1 : index
    %c5_23 = arith.constant 5 : index
    %62 = memref.load %arg1[%c1_22, %c5_23] : memref<2x7xf32, #tpu.memory_space<smem>>
    %63 = vector.extract_strided_slice %5 {offsets = [0, 5], sizes = [2, 16], strides = [1, 1]} : vector<2x22xf32> to vector<2x16xf32>
    %64 = vector.broadcast %62 : f32 to vector<2x16xf32>
    %65 = arith.mulf %64, %63 : vector<2x16xf32>
    %66 = arith.addf %61, %65 : vector<2x16xf32>
    %c0_24 = arith.constant 0 : index
    %c6 = arith.constant 6 : index
    %67 = memref.load %arg1[%c0_24, %c6] : memref<2x7xf32, #tpu.memory_space<smem>>
    %68 = vector.extract_strided_slice %4 {offsets = [0, 6], sizes = [2, 16], strides = [1, 1]} : vector<2x22xf32> to vector<2x16xf32>
    %69 = vector.broadcast %67 : f32 to vector<2x16xf32>
    %70 = arith.mulf %69, %68 : vector<2x16xf32>
    %71 = arith.addf %66, %70 : vector<2x16xf32>
    %c1_25 = arith.constant 1 : index
    %c6_26 = arith.constant 6 : index
    %72 = memref.load %arg1[%c1_25, %c6_26] : memref<2x7xf32, #tpu.memory_space<smem>>
    %73 = vector.extract_strided_slice %5 {offsets = [0, 6], sizes = [2, 16], strides = [1, 1]} : vector<2x22xf32> to vector<2x16xf32>
    %74 = vector.broadcast %72 : f32 to vector<2x16xf32>
    %75 = arith.mulf %74, %73 : vector<2x16xf32>
    %76 = arith.addf %71, %75 : vector<2x16xf32>
    %77 = arith.negf %76 : vector<2x16xf32>
    %78 = math.exp %77 : vector<2x16xf32>
    %cst_27 = arith.constant 1.000000e+00 : f32
    %79 = vector.broadcast %cst_27 : f32 to vector<2x16xf32>
    %80 = arith.addf %79, %78 : vector<2x16xf32>
    %81 = arith.divf %79, %80 : vector<2x16xf32>
    %c0_28 = arith.constant 0 : index
    %c0_29 = arith.constant 0 : index
    %82 = vector.load %arg3[%c0_28, %c0_29] : memref<2x16xf32, #tpu.memory_space<vmem>>, vector<2x16xf32>
    tpu.vector_store %arg3[%c0_28, %c0_29], %81 {strides = array<i32>} : memref<2x16xf32, #tpu.memory_space<vmem>>, vector<2x16xf32>,
    return
  }
  func.func @transform_0(%arg0: i32) -> (i32, i32) {
    %c0_i32 = arith.constant 0 : i32
    %c0_i32_0 = arith.constant 0 : i32
    %c0_i32_1 = arith.constant 0 : i32
    return %c0_i32, %c0_i32_0 : i32, i32
  }
  func.func @transform_1(%arg0: i32) -> (i32, i32, i32) {
    %c0_i32 = arith.constant 0 : i32
    %c0_i32_0 = arith.constant 0 : i32
    %c0_i32_1 = arith.constant 0 : i32
    return %arg0, %c0_i32, %c0_i32_0 : i32, i32, i32
  }
  func.func @transform_2(%arg0: i32) -> (i32, i32) {
    %c0_i32 = arith.constant 0 : i32
    %c0_i32_0 = arith.constant 0 : i32
    return %arg0, %c0_i32 : i32, i32
  }
}

</mosaic_0001>

<llo_original>
// kernel: tpu_custom_call.1
$region0: #{tpu_custom_call.1}
  #allocation0 [shape = 'u32[]', space=smem, size = 0x4, offset = 0x4, fixed_abs, tag = 'smem constant byte address 0x4 - core index']
  #allocation1 [shape = 'u32[144,128]{1,0:T(1,128)}', space=vmem, size = 0x12000, scoped, tag = 'internal scratch']
  %s0 = inlined_call_operand.hbm [shape: f32[2,7], index: 0, kind: input, shape index: {}]
  %s1 = inlined_call_operand.hbm [shape: f32[2,8,16], index: 1, kind: input, shape index: {}]
  %s2 = inlined_call_operand.hbm [shape: f32[2,16], index: 2, kind: output, shape index: {}]
  %s3 = sld [smem:[#allocation0]]
  $region26: #{tpu_custom_call.1} parent=0
    _
  %s5 = ssub.s32 1, %s3
  %s6 = scalar_select 0, %s5, %s3
  $region1: #{tpu_custom_call.1} parent=0
    #allocation2 [shape = 'u8[1024]{0}', space=smem, size = 0x400, scoped, tag = 'input window, operand 0, single buffered']
    #allocation3 [shape = 's32[1]{0}', space=sflag, size = 0x4, scoped, tag = 'scoped memory for tpu_custom_call.1']
    #allocation4 [shape = 's32[1]{0}', space=sflag, size = 0x4, scoped, tag = 'scoped memory for tpu_custom_call.1']
    #allocation5 [shape = 's32[1]{0}', space=sflag, size = 0x4, scoped, tag = 'scoped memory for tpu_custom_call.1']
    #allocation6 [shape = 'u8[8192]{0}', space=vmem, size = 0x2000, scoped, tag = 'input window, operand 1, single buffered']
    #allocation7 [shape = 'u8[1024]{0}', space=vmem, size = 0x400, scoped, tag = 'output window, operand 0, single buffered']
    %7 = vsyncpa [#allocation5], 0
    %8 = vsyncpa [#allocation3], 0
    %9 = vsyncpa [#allocation4], 0
    // Predicated region
    $region2: #{tpu_custom_call.1} parent=1 // pred_check
      _
    $region3: #{tpu_custom_call.1} parent=1 // pred_check_branch
      %11 = sbr.rel (0) target = $region5
    $region4: #{tpu_custom_call.1} parent=1 // pred_region
      %s13 = ssub.s32 32, 32
      %14 = vsyncadd [#allocation5], %s13
      %17 = dma.hbm_to_smem %s0, 32, [#allocation2], [#allocation5]
    $region5: #{tpu_custom_call.1} parent=1 // pred_fallthru
      _
    // Predicated region
    $region6: #{tpu_custom_call.1} parent=1 // pred_check
      _
    $region7: #{tpu_custom_call.1} parent=1 // pred_check_branch
      %19 = sbr.rel (0) target = $region9
    $region8: #{tpu_custom_call.1} parent=1 // pred_region
      %s21 = ssub.s32 256, 256
      %22 = vsyncadd [#allocation3], %s21
      %s23 = sshll.u32 [#allocation6], 4
      %s24 = int_to_ptr.vmem [resolvable:$true] %s23
      %29 = dma.hbm_to_vmem [thread:$0]  %s1, 256, %s24, [#allocation3], 128, 128, 8
    $region9: #{tpu_custom_call.1} parent=1 // pred_fallthru
      _
    // Predicated region
    $region10: #{tpu_custom_call.1} parent=1 // pred_check
      _
    $region11: #{tpu_custom_call.1} parent=1 // pred_check_branch
      %31 = sbr.rel (0) target = $region13
    $region12: #{tpu_custom_call.1} parent=1 // pred_region
      %32 = dma.done [#allocation5], 32
    $region13: #{tpu_custom_call.1} parent=1 // pred_fallthru
      _
    // Predicated region
    $region14: #{tpu_custom_call.1} parent=1 // pred_check
      _
    $region15: #{tpu_custom_call.1} parent=1 // pred_check_branch
      %34 = sbr.rel (0) target = $region17
    $region16: #{tpu_custom_call.1} parent=1 // pred_region
      %35 = dma.done [#allocation3], 256
    $region17: #{tpu_custom_call.1} parent=1 // pred_fallthru
      _
    %36 = sfence
    %v37 = vld [vmem:[#allocation6] sm:$0xff]
    %v38 = vld [vmem:[#allocation6 + $0x8] sm:$0xff]
    %vm39 = vcmask 130048
    %v40 = vsel %vm39, %v37, 0.0
    %v41 = vrot.slane %v40, 4
    %v42 = vadd.f32 %v40, %v41
    %v43 = vrot.slane %v42, 2
    %v44 = vadd.f32 %v42, %v43
    %v45 = vrot.slane %v44, 1
    %v46 = vadd.f32 %v44, %v45
    %v47 = vsel %vm39, %v38, 0.0
    %v48 = vrot.slane %v47, 4
    %v49 = vadd.f32 %v47, %v48
    %v50 = vrot.slane %v49, 2
    %v51 = vadd.f32 %v49, %v50
    %v52 = vrot.slane %v51, 1
    %v53 = vadd.f32 %v51, %v52
    %v54 = vsel %vm39, %v37, -inf
    %v55 = vrot.slane %v54, 4
    %v56 = vmax.f32 %v54, %v55
    %v57 = vrot.slane %v56, 2
    %v58 = vmax.f32 %v56, %v57
    %v59 = vrot.slane %v58, 1
    %v60 = vmax.f32 %v58, %v59
    %v61 = vsel %vm39, %v38, -inf
    %v62 = vrot.slane %v61, 4
    %v63 = vmax.f32 %v61, %v62
    %v64 = vrot.slane %v63, 2
    %v65 = vmax.f32 %v63, %v64
    %v66 = vrot.slane %v65, 1
    %v67 = vmax.f32 %v65, %v66
    %vm70 = vcmask 1041409
    %v71 = vsel %vm70, %v53, %v46
    %72 = vrot.lane.b32.xlu0 %v71, 3
    %v73 = vpop.permute.xlu0 %72
    %vm75 = vcmask 23552
    %v76 = vsel %vm75, 0.0, %v73
    %vm77 = vcmask 154624
    %v78 = vsel %vm77, %v76, 0.0
    %v81 = vsel %vm70, %v67, %v60
    %82 = vrot.lane.b32.xlu0 %v81, 3
    %v83 = vpop.permute.xlu0 %82
    %v85 = vsel %vm75, 0.0, %v83
    %v86 = vsel %vm77, %v85, 0.0
    %s87 = sld [smem:[#allocation2]]
    %v88 = vstv %s87
    %v89 = vmul.f32 %v88, %v78
    %v90 = vadd.f32 %v89, 0.0
    %s91 = sld [smem:[#allocation2 + $0x80]]
    %v92 = vstv %s91
    %v93 = vmul.f32 %v92, %v86
    %v94 = vadd.f32 %v90, %v93
    %s95 = sld [smem:[#allocation2 + $0x1]]
    %v96 = vstv %s95
    %v97 = vmul.f32 %v96, %v78
    %99 = vrot.lane.b32.xlu0 %v97, 127
    %v100 = vpop.permute.xlu0 %99
    %v102 = vadd.f32 %v94, %v100
    %s103 = sld [smem:[#allocation2 + $0x81]]
    %v104 = vstv %s103
    %v105 = vmul.f32 %v104, %v86
    %107 = vrot.lane.b32.xlu0 %v105, 127
    %v108 = vpop.permute.xlu0 %107
    %v110 = vadd.f32 %v102, %v108
    %s111 = sld [smem:[#allocation2 + $0x2]]
    %v112 = vstv %s111
    %v113 = vmul.f32 %v112, %v78
    %115 = vrot.lane.b32.xlu0 %v113, 126
    %v116 = vpop.permute.xlu0 %115
    %v118 = vadd.f32 %v110, %v116
    %s119 = sld [smem:[#allocation2 + $0x82]]
    %v120 = vstv %s119
    %v121 = vmul.f32 %v120, %v86
    %123 = vrot.lane.b32.xlu0 %v121, 126
    %v124 = vpop.permute.xlu0 %123
    %v126 = vadd.f32 %v118, %v124
    %s127 = sld [smem:[#allocation2 + $0x3]]
    %v128 = vstv %s127
    %v129 = vmul.f32 %v128, %v78
    %131 = vrot.lane.b32.xlu0 %v129, 125
    %v132 = vpop.permute.xlu0 %131
    %v134 = vadd.f32 %v126, %v132
    %s135 = sld [smem:[#allocation2 + $0x83]]
    %v136 = vstv %s135
    %v137 = vmul.f32 %v136, %v86
    %139 = vrot.lane.b32.xlu0 %v137, 125
    %v140 = vpop.permute.xlu0 %139
    %v142 = vadd.f32 %v134, %v140
    %s143 = sld [smem:[#allocation2 + $0x4]]
    %v144 = vstv %s143
    %v145 = vmul.f32 %v144, %v78
    %147 = vrot.lane.b32.xlu0 %v145, 124
    %v148 = vpop.permute.xlu0 %147
    %v150 = vadd.f32 %v142, %v148
    %s151 = sld [smem:[#allocation2 + $0x84]]
    %v152 = vstv %s151
    %v153 = vmul.f32 %v152, %v86
    %155 = vrot.lane.b32.xlu0 %v153, 124
    %v156 = vpop.permute.xlu0 %155
    %v158 = vadd.f32 %v150, %v156
    %s159 = sld [smem:[#allocation2 + $0x5]]
    %v160 = vstv %s159
    %v161 = vmul.f32 %v160, %v78
    %163 = vrot.lane.b32.xlu0 %v161, 123
    %v164 = vpop.permute.xlu0 %163
    %v166 = vadd.f32 %v158, %v164
    %s167 = sld [smem:[#allocation2 + $0x85]]
    %v168 = vstv %s167
    %v169 = vmul.f32 %v168, %v86
    %171 = vrot.lane.b32.xlu0 %v169, 123
    %v172 = vpop.permute.xlu0 %171
    %v174 = vadd.f32 %v166, %v172
    %s175 = sld [smem:[#allocation2 + $0x6]]
    %v176 = vstv %s175
    %v177 = vmul.f32 %v176, %v78
    %179 = vrot.lane.b32.xlu0 %v177, 122
    %v180 = vpop.permute.xlu0 %179
    %v182 = vadd.f32 %v174, %v180
    %s183 = sld [smem:[#allocation2 + $0x86]]
    %v184 = vstv %s183
    %v185 = vmul.f32 %v184, %v86
    %187 = vrot.lane.b32.xlu0 %v185, 122
    %v188 = vpop.permute.xlu0 %187
    %v190 = vadd.f32 %v182, %v188
    %v191 = vxor.u32 %v190, 2147483648
    %v192 = vmul.f32 %v191, 1.442695
    %v193 = vpow.pop %v192
    %v194 = vadd.f32 %v193, 1.0
    %v195 = vrcp.pop %v194
    %v196 = vmul.f32 1.0, %v195
    %vm197 = vcmask 123904
    %198 = vst.msk [vmem:[#allocation7] sm:$0x3] %vm197, %v196
    // Predicated region
    $region18: #{tpu_custom_call.1} parent=1 // pred_check
      _
    $region19: #{tpu_custom_call.1} parent=1 // pred_check_branch
      %200 = sbr.rel (0) target = $region21
    $region20: #{tpu_custom_call.1} parent=1 // pred_region
      %s202 = ssub.s32 32, 32
      %203 = vsyncadd [#allocation4], %s202
      %s205 = sshll.u32 [#allocation7], 4
      %s206 = int_to_ptr.vmem [resolvable:$true] %s205
      %208 = dma.vmem_to_hbm [thread:$0]  %s206, 32, %s2, [#allocation4]
    $region21: #{tpu_custom_call.1} parent=1 // pred_fallthru
      _
    // Predicated region
    $region22: #{tpu_custom_call.1} parent=1 // pred_check
      _
    $region23: #{tpu_custom_call.1} parent=1 // pred_check_branch
      %210 = sbr.rel (0) target = $region25
    $region24: #{tpu_custom_call.1} parent=1 // pred_region
      %211 = dma.done [#allocation4], 32
    $region25: #{tpu_custom_call.1} parent=1 // pred_fallthru
      _
    %212 = vsyncpa [#allocation3], 1
    %213 = vsyncpa [#allocation4], 1
    %214 = vsyncpa [#allocation5], 1

</llo_original>
